<compile_context>
chip_gen: v5e
topology: v5e:2x2
jax: 0.10.0
libtpu: 0.0.40
codegen_flags: <defaults>
</compile_context>

<pallas_src>
import jax
import jax.numpy as jnp
from jax.experimental import pallas as pl
from jax.experimental.pallas import tpu as pltpu


def _dff_kernel(x_ref, s_ref, wx_ref, ws_ref, w1_ref, w2_ref, b_ref, out_ref):
    # x_ref / s_ref / out_ref blocks : (1, C, TS)   lane-dense spatial tile
    # wx_ref / ws_ref blocks         : (1, C, C)    per-batch channel-att-folded weights
    # w1_ref / w2_ref                : (1, C)       spatial-attention conv weights
    # b_ref                          : (1, 1) SMEM  scalar (b1 + b2)
    x = x_ref[0].astype(jnp.float32)       # [C, TS]
    sk = s_ref[0].astype(jnp.float32)      # [C, TS]

    # Reduction conv with the channel attention folded in (exact).
    z = (jnp.dot(wx_ref[0], x, preferred_element_type=jnp.float32)
         + jnp.dot(ws_ref[0], sk, preferred_element_type=jnp.float32))      # [C, TS]

    # Spatial-attention logits as a separate 1-row result (no [C+1, TS]
    # intermediate and no sublane-crossing slices).
    logits = (jnp.dot(w1_ref[...], x, preferred_element_type=jnp.float32)
              + jnp.dot(w2_ref[...], sk, preferred_element_type=jnp.float32)
              + b_ref[0, 0])                                                 # [1, TS]

    out_ref[0] = (z * jax.nn.sigmoid(logits)).astype(out_ref.dtype)


def _round_up(n, m):
    return ((n + m - 1) // m) * m


def _vmem_capacity_bytes():
    try:
        return int(pltpu.get_tpu_info().vmem_capacity_bytes)
    except Exception:
        return 64 * 1024 * 1024  # conservative fallback (v7x per-TC VMEM)


def _choose_s_tile(S_pad, C, in_bytes, out_bytes, B, max_tile):
    """Largest lane-dense (multiple-of-128) spatial tile fitting a VMEM budget."""
    vmem_cap = _vmem_capacity_bytes()
    budget = vmem_cap // 2                       # headroom for weights / compiler scratch
    per_ts = 2 * C * (2 * in_bytes + out_bytes)  # double-buffered x + skip + out per TS elem
    ts = (budget // per_ts) // 128 * 128
    ts = max(128, min(ts, max_tile, S_pad))
    # Megacore guard (v7x: 2 TCs share 'parallel' grid axes): keep >= 8 steps if
    # that can be done without dropping below a 512-wide tile.
    while B * pl.cdiv(S_pad, ts) < 8 and ts > 512:
        ts = max(512, ((ts // 2) // 128) * 128)
    needed = per_ts * ts + 2 * B * C * C * 4 + 2 * C * 4 + (4 << 20)
    vmem_limit = int(min(vmem_cap - (1 << 20), max(needed, 32 << 20)))
    return ts, vmem_limit


def dff_pallas(x, skip, w_att, w_redu, w1, b1, w2, b2, *,
               stream_dtype=None, max_tile=32768):
    """x, skip: [B, C, D, H, W] (NCDHW, like PyTorch). Returns [B, C, D, H, W].

    stream_dtype: optional dtype (e.g. jnp.bfloat16) to stream activations and
    the output through HBM at half width; weights/accumulation remain f32.
    """
    B, C, D, H, W = x.shape
    S = D * H * W

    # NCDHW -> [B, C, S] is a reshape only (no HBM transpose).
    x_k = x.reshape(B, C, S)
    s_k = skip.reshape(B, C, S)

    # ---- Pass 1 (tiny): global average pool + channel attention.
    # dtype=f32 keeps the accumulation inside the fused XLA reduce (no f32 copy).
    mean_x = jnp.mean(x_k, axis=2, dtype=jnp.float32)                      # [B, C]
    mean_s = jnp.mean(s_k, axis=2, dtype=jnp.float32)                      # [B, C]
    mean_cat = jnp.concatenate([mean_x, mean_s], axis=1)                   # [B, 2C]
    att_c = jax.nn.sigmoid(mean_cat @ w_att.astype(jnp.float32).T)         # [B, 2C]

    # Fold channel attention into the reduction-conv weights (exact):
    #   out[b,o,s] = sum_i w_redu[o,i] * att_c[b,i] * cat[b,i,s]
    w_eff = w_redu.astype(jnp.float32)[None, :, :] * att_c[:, None, :]     # [B, C, 2C]
    wx_eff = w_eff[:, :, :C]                                               # [B, C, C]
    ws_eff = w_eff[:, :, C:]                                               # [B, C, C]
    w1_f = w1.reshape(1, C).astype(jnp.float32)
    w2_f = w2.reshape(1, C).astype(jnp.float32)
    bias = (b1 + b2).reshape(1, 1).astype(jnp.float32)                     # scalar

    out_dtype = stream_dtype if stream_dtype is not None else x.dtype
    if stream_dtype is not None:
        x_k = x_k.astype(stream_dtype)
        s_k = s_k.astype(stream_dtype)

    # Pad the spatial axis to a multiple of 128 -> lane-dense tiles and stores.
    S_pad = _round_up(S, 128)
    if S_pad != S:
        pad = ((0, 0), (0, 0), (0, S_pad - S))
        x_k = jnp.pad(x_k, pad)
        s_k = jnp.pad(s_k, pad)

    in_bytes = jnp.dtype(x_k.dtype).itemsize
    out_bytes = jnp.dtype(out_dtype).itemsize
    TS, vmem_limit = _choose_s_tile(S_pad, C, in_bytes, out_bytes, B, max_tile)
    grid = (B, pl.cdiv(S_pad, TS))   # partial last tile handled by Pallas masking

    # Note: if profiling shows exposed DMA at very large TS, add
    # pipeline_mode=pl.Buffered(3) to the x/skip BlockSpecs.
    out = pl.pallas_call(
        _dff_kernel,
        out_shape=jax.ShapeDtypeStruct((B, C, S_pad), out_dtype),
        grid_spec=pltpu.PrefetchScalarGridSpec(
            num_scalar_prefetch=0,
            grid=grid,
            in_specs=[
                pl.BlockSpec((1, C, TS), lambda b, s: (b, 0, s)),       # x tile
                pl.BlockSpec((1, C, TS), lambda b, s: (b, 0, s)),       # skip tile
                pl.BlockSpec((1, C, C), lambda b, s: (b, 0, 0)),        # folded W (x half)
                pl.BlockSpec((1, C, C), lambda b, s: (b, 0, 0)),        # folded W (skip half)
                pl.BlockSpec((1, C), lambda b, s: (0, 0)),              # w1
                pl.BlockSpec((1, C), lambda b, s: (0, 0)),              # w2
                pl.BlockSpec(memory_space=pltpu.MemorySpace.SMEM),      # scalar bias
            ],
            out_specs=pl.BlockSpec((1, C, TS), lambda b, s: (b, 0, s)),
        ),
        compiler_params=pltpu.CompilerParams(
            dimension_semantics=("parallel", "parallel"),
            vmem_limit_bytes=vmem_limit),
    )(x_k, s_k, wx_eff, ws_eff, w1_f, w2_f, bias)

    if S_pad != S:
        out = out[:, :, :S]
    return out.reshape(B, C, D, H, W)


def dff_reference(x, skip, w_att, w_redu, w1, b1, w2, b2):
    """Pure-JAX reference mirroring the PyTorch forward exactly (NCDHW)."""
    cat = jnp.concatenate([x, skip], axis=1)                       # [B, 2C, D, H, W]
    avg = jnp.mean(cat, axis=(2, 3, 4), keepdims=True)             # [B, 2C, 1, 1, 1]
    att = jax.nn.sigmoid(jnp.einsum('oi,bidhw->bodhw', w_att, avg))
    out = cat * att
    out = jnp.einsum('oi,bidhw->bodhw', w_redu, out)               # [B, C, D, H, W]
    att2 = (jnp.einsum('oi,bidhw->bodhw', w1, x) + b1.reshape(1, 1, 1, 1, 1)
            + jnp.einsum('oi,bidhw->bodhw', w2, skip) + b2.reshape(1, 1, 1, 1, 1))
    att2 = jax.nn.sigmoid(att2)
    return out * att2


if __name__ == "__main__":
    B, C, D, H, W = 2, 4, 8, 8, 8
    key = jax.random.PRNGKey(0)
    k_x, k_s, k_wa, k_wr, k_w1, k_b1, k_w2, k_b2 = jax.random.split(key, 8)

    x = jax.random.normal(k_x, (B, C, D, H, W), dtype=jnp.float32)
    skip = jax.random.normal(k_s, (B, C, D, H, W), dtype=jnp.float32)

    # Deterministic synthetic parameters (shapes from the module __init__).
    w_att = 0.1 * jax.random.normal(k_wa, (2 * C, 2 * C), dtype=jnp.float32)  # Conv3d(2C,2C,1,bias=False)
    w_redu = 0.1 * jax.random.normal(k_wr, (C, 2 * C), dtype=jnp.float32)     # Conv3d(2C,C,1,bias=False)
    w1 = 0.1 * jax.random.normal(k_w1, (1, C), dtype=jnp.float32)             # Conv3d(C,1,1,bias=True)
    b1 = 0.1 * jax.random.normal(k_b1, (1,), dtype=jnp.float32)
    w2 = 0.1 * jax.random.normal(k_w2, (1, C), dtype=jnp.float32)             # Conv3d(C,1,1,bias=True)
    b2 = 0.1 * jax.random.normal(k_b2, (1,), dtype=jnp.float32)

    # f32 path: exact vs. pure-JAX reference.
    dff_f32 = jax.jit(lambda *a: dff_pallas(*a))
    out = dff_f32(x, skip, w_att, w_redu, w1, b1, w2, b2)
    jax.block_until_ready(out)

    ref = dff_reference(x, skip, w_att, w_redu, w1, b1, w2, b2)
    assert out.shape == (B, C, D, H, W)
    assert jnp.allclose(out, ref, rtol=1e-5, atol=1e-5), "mismatch vs reference"

    # bf16 activation-streaming path: sanity-run (loose numerical check only).
    dff_bf16 = jax.jit(lambda *a: dff_pallas(*a, stream_dtype=jnp.bfloat16))
    out_bf = dff_bf16(x, skip, w_att, w_redu, w1, b1, w2, b2)
    jax.block_until_ready(out_bf)
    assert out_bf.shape == (B, C, D, H, W)
    assert bool(jnp.all(jnp.isfinite(out_bf.astype(jnp.float32))))
    assert jnp.allclose(out_bf.astype(jnp.float32), ref, rtol=6e-2, atol=6e-2)

    print("KERNEL_OK")
</pallas_src>

<mosaic_0001>
module attributes {stable_mosaic.version = 11 : i64} {
  func.func @_dff_kernel(%arg0: i32, %arg1: i32, %arg2: memref<1x4x512xf32, #tpu.memory_space<vmem>>, %arg3: memref<1x4x512xf32, #tpu.memory_space<vmem>>, %arg4: memref<1x4x4xf32, #tpu.memory_space<vmem>>, %arg5: memref<1x4x4xf32, #tpu.memory_space<vmem>>, %arg6: memref<1x4xf32, #tpu.memory_space<vmem>>, %arg7: memref<1x4xf32, #tpu.memory_space<vmem>>, %arg8: memref<1x1xf32, #tpu.memory_space<smem>>, %arg9: memref<1x4x512xf32, #tpu.memory_space<vmem>>) attributes {dimension_semantics = [#tpu.dimension_semantics<parallel>, #tpu.dimension_semantics<parallel>], iteration_bounds = array<i64: 2, 1>, scalar_prefetch = 0 : i64, scratch_operands = 0 : i64, tpu.core_type = #tpu.core_type<tc>, window_params = [{transform_indices = @transform_0, window_bounds = array<i64: 1, 4, 512>}, {transform_indices = @transform_1, window_bounds = array<i64: 1, 4, 512>}, {transform_indices = @transform_2, window_bounds = array<i64: 1, 4, 4>}, {transform_indices = @transform_3, window_bounds = array<i64: 1, 4, 4>}, {pipeline_mode = #tpu.pipeline_mode<synchronous>, transform_indices = @transform_4, window_bounds = array<i64: 1, 4>}, {pipeline_mode = #tpu.pipeline_mode<synchronous>, transform_indices = @transform_5, window_bounds = array<i64: 1, 4>}, {transform_indices = @transform_6, window_bounds = array<i64: 1, 1>}, {transform_indices = @transform_7, window_bounds = array<i64: 1, 4, 512>}]} {
    %c0 = arith.constant 0 : index
    %c0_0 = arith.constant 0 : index
    %c0_1 = arith.constant 0 : index
    %0 = vector.load %arg2[%c0, %c0_0, %c0_1] : memref<1x4x512xf32, #tpu.memory_space<vmem>>, vector<1x4x512xf32>
    %1 = vector.shape_cast %0 : vector<1x4x512xf32> to vector<4x512xf32>
    %c0_2 = arith.constant 0 : index
    %c0_3 = arith.constant 0 : index
    %c0_4 = arith.constant 0 : index
    %2 = vector.load %arg3[%c0_2, %c0_3, %c0_4] : memref<1x4x512xf32, #tpu.memory_space<vmem>>, vector<1x4x512xf32>
    %3 = vector.shape_cast %2 : vector<1x4x512xf32> to vector<4x512xf32>
    %c0_5 = arith.constant 0 : index
    %c0_6 = arith.constant 0 : index
    %c0_7 = arith.constant 0 : index
    %4 = vector.load %arg4[%c0_5, %c0_6, %c0_7] : memref<1x4x4xf32, #tpu.memory_space<vmem>>, vector<1x4x4xf32>
    %5 = vector.shape_cast %4 : vector<1x4x4xf32> to vector<4x4xf32>
    %cst = arith.constant dense<0.000000e+00> : vector<4x512xf32>
    %6 = tpu.matmul %5, %1, %cst {dimension_numbers = #tpu.dot_dimension_numbers<[1], [0], [0], [1], [0, 0, 1, 1], [], []>} : vector<4x4xf32>, vector<4x512xf32>, vector<4x512xf32> -> vector<4x512xf32>
    %c0_8 = arith.constant 0 : index
    %c0_9 = arith.constant 0 : index
    %c0_10 = arith.constant 0 : index
    %7 = vector.load %arg5[%c0_8, %c0_9, %c0_10] : memref<1x4x4xf32, #tpu.memory_space<vmem>>, vector<1x4x4xf32>
    %8 = vector.shape_cast %7 : vector<1x4x4xf32> to vector<4x4xf32>
    %cst_11 = arith.constant dense<0.000000e+00> : vector<4x512xf32>
    %9 = tpu.matmul %8, %3, %cst_11 {dimension_numbers = #tpu.dot_dimension_numbers<[1], [0], [0], [1], [0, 0, 1, 1], [], []>} : vector<4x4xf32>, vector<4x512xf32>, vector<4x512xf32> -> vector<4x512xf32>
    %10 = arith.addf %6, %9 : vector<4x512xf32>
    %c0_12 = arith.constant 0 : index
    %c0_13 = arith.constant 0 : index
    %11 = vector.load %arg6[%c0_12, %c0_13] : memref<1x4xf32, #tpu.memory_space<vmem>>, vector<1x4xf32>
    %cst_14 = arith.constant dense<0.000000e+00> : vector<1x512xf32>
    %12 = tpu.matmul %11, %1, %cst_14 {dimension_numbers = #tpu.dot_dimension_numbers<[1], [0], [0], [1], [0, 0, 1, 1], [], []>} : vector<1x4xf32>, vector<4x512xf32>, vector<1x512xf32> -> vector<1x512xf32>
    %c0_15 = arith.constant 0 : index
    %c0_16 = arith.constant 0 : index
    %13 = vector.load %arg7[%c0_15, %c0_16] : memref<1x4xf32, #tpu.memory_space<vmem>>, vector<1x4xf32>
    %cst_17 = arith.constant dense<0.000000e+00> : vector<1x512xf32>
    %14 = tpu.matmul %13, %3, %cst_17 {dimension_numbers = #tpu.dot_dimension_numbers<[1], [0], [0], [1], [0, 0, 1, 1], [], []>} : vector<1x4xf32>, vector<4x512xf32>, vector<1x512xf32> -> vector<1x512xf32>
    %15 = arith.addf %12, %14 : vector<1x512xf32>
    %c0_18 = arith.constant 0 : index
    %c0_19 = arith.constant 0 : index
    %16 = memref.load %arg8[%c0_18, %c0_19] : memref<1x1xf32, #tpu.memory_space<smem>>
    %17 = vector.broadcast %16 : f32 to vector<1x512xf32>
    %18 = arith.addf %15, %17 : vector<1x512xf32>
    %19 = arith.negf %18 : vector<1x512xf32>
    %20 = math.exp %19 : vector<1x512xf32>
    %cst_20 = arith.constant 1.000000e+00 : f32
    %21 = vector.broadcast %cst_20 : f32 to vector<1x512xf32>
    %22 = arith.addf %21, %20 : vector<1x512xf32>
    %23 = arith.divf %21, %22 : vector<1x512xf32>
    %24 = vector.broadcast %23 : vector<1x512xf32> to vector<4x512xf32>
    %25 = arith.mulf %10, %24 : vector<4x512xf32>
    %c0_21 = arith.constant 0 : index
    %c0_22 = arith.constant 0 : index
    %c0_23 = arith.constant 0 : index
    %26 = vector.load %arg9[%c0_21, %c0_22, %c0_23] : memref<1x4x512xf32, #tpu.memory_space<vmem>>, vector<1x4x512xf32>
    %27 = vector.shape_cast %26 : vector<1x4x512xf32> to vector<4x512xf32>
    %28 = vector.shape_cast %25 : vector<4x512xf32> to vector<1x4x512xf32>
    tpu.vector_store %arg9[%c0_21, %c0_22, %c0_23], %28 {strides = array<i32>} : memref<1x4x512xf32, #tpu.memory_space<vmem>>, vector<1x4x512xf32>,
    return
  }
  func.func @transform_0(%arg0: i32, %arg1: i32) -> (i32, i32, i32) {
    %c0_i32 = arith.constant 0 : i32
    %c0_i32_0 = arith.constant 0 : i32
    return %arg0, %c0_i32, %arg1 : i32, i32, i32
  }
  func.func @transform_1(%arg0: i32, %arg1: i32) -> (i32, i32, i32) {
    %c0_i32 = arith.constant 0 : i32
    %c0_i32_0 = arith.constant 0 : i32
    return %arg0, %c0_i32, %arg1 : i32, i32, i32
  }
  func.func @transform_2(%arg0: i32, %arg1: i32) -> (i32, i32, i32) {
    %c0_i32 = arith.constant 0 : i32
    %c0_i32_0 = arith.constant 0 : i32
    %c0_i32_1 = arith.constant 0 : i32
    return %arg0, %c0_i32, %c0_i32_0 : i32, i32, i32
  }
  func.func @transform_3(%arg0: i32, %arg1: i32) -> (i32, i32, i32) {
    %c0_i32 = arith.constant 0 : i32
    %c0_i32_0 = arith.constant 0 : i32
    %c0_i32_1 = arith.constant 0 : i32
    return %arg0, %c0_i32, %c0_i32_0 : i32, i32, i32
  }
  func.func @transform_4(%arg0: i32, %arg1: i32) -> (i32, i32) {
    %c0_i32 = arith.constant 0 : i32
    %c0_i32_0 = arith.constant 0 : i32
    %c0_i32_1 = arith.constant 0 : i32
    return %c0_i32, %c0_i32_0 : i32, i32
  }
  func.func @transform_5(%arg0: i32, %arg1: i32) -> (i32, i32) {
    %c0_i32 = arith.constant 0 : i32
    %c0_i32_0 = arith.constant 0 : i32
    %c0_i32_1 = arith.constant 0 : i32
    return %c0_i32, %c0_i32_0 : i32, i32
  }
  func.func @transform_6(%arg0: i32, %arg1: i32) -> (i32, i32) {
    %c0_i32 = arith.constant 0 : i32
    %c0_i32_0 = arith.constant 0 : i32
    %c0_i32_1 = arith.constant 0 : i32
    return %c0_i32, %c0_i32_0 : i32, i32
  }
  func.func @transform_7(%arg0: i32, %arg1: i32) -> (i32, i32, i32) {
    %c0_i32 = arith.constant 0 : i32
    %c0_i32_0 = arith.constant 0 : i32
    return %arg0, %c0_i32, %arg1 : i32, i32, i32
  }
}

</mosaic_0001>

<llo_original>
// kernel: _lambda_.1
$region0: #{_lambda_.1}
  #allocation0 [shape = 'u32[]', space=smem, size = 0x4, offset = 0x4, fixed_abs, tag = 'smem constant byte address 0x4 - core index']
  #allocation1 [shape = 'u32[72,128]{1,0:T(1,128)}', space=vmem, size = 0x9000, scoped, tag = 'internal scratch']
  #allocation2 [shape = 'f32[1,1]{1,0:T(1,128)S(6)}', space=smem, size = 0x200, scoped, tag = 'scoped memory for _lambda_.1']
  %s0 = inlined_call_operand.vmem [shape: f32[2,4,512], index: 0, kind: input, shape index: {}]
  %s1 = inlined_call_operand.vmem [shape: f32[2,4,512], index: 1, kind: input, shape index: {}]
  %s2 = inlined_call_operand.vmem [shape: f32[2,4,4], index: 2, kind: input, shape index: {}]
  %s3 = inlined_call_operand.vmem [shape: f32[2,4,4], index: 3, kind: input, shape index: {}]
  %s4 = inlined_call_operand.vmem [shape: f32[1,4], index: 4, kind: input, shape index: {}]
  %s5 = inlined_call_operand.vmem [shape: f32[1,4], index: 5, kind: input, shape index: {}]
  %s6 = inlined_call_operand.<no memory space> [shape: f32[1,1], index: 6, kind: input, shape index: {}]
  %s7 = inlined_call_operand.vmem [shape: f32[2,4,512], index: 7, kind: output, shape index: {}]
  %s8 = sld [smem:[#allocation0]]
  $region61: #{_lambda_.1} parent=0
    _
  %s10 = ssub.s32 1, %s8
  %s11 = scalar_select 0, %s10, %s8
  %12 = sst [smem:[#allocation2]] %s6
  loop: start=0, step=1, limit=4
  $region2: #{_lambda_.1} parent=0 // loop_pre_header
    _
  $region3: #{_lambda_.1} parent=0 // loop_header
    %s14 = sphi 0, %s18
    %p15 = scmp.ge.s32.totalorder %s14, 4
    %s21 = sphi 0, %s33
    %s22 = sphi 0, %s29
    %s23 = sphi 0, %s21
    %s24 = sphi 0, %s22
    %s25 = sphi 0, %s23
    %s26 = sphi 0, %s24
    %s38 = sphi 0, %s40
    %s41 = sphi 0, %s38
    %s42 = sphi 0, %s41
    %s58 = sphi 0, %s42
    %s66 = sphi 0, %s68
    %s69 = sphi 0, %s66
    %s70 = sphi 0, %s69
    %s86 = sphi 0, %s70
    %s92 = sphi 0, %s94
    %s95 = sphi 0, %s92
    %s96 = sphi 0, %s95
    %s112 = sphi 0, %s96
    %s118 = sphi 0, %s120
    %s121 = sphi 0, %s118
    %s122 = sphi 0, %s121
    %s138 = sphi 0, %s122
    %s142 = sphi 0, %s142
    %s144 = sphi 0, %s142
    %s145 = sphi 0, %s144
    %s159 = sphi 0, %s145
    %s163 = sphi 0, %s163
    %s165 = sphi 0, %s163
    %s166 = sphi 0, %s165
    %s180 = sphi 0, %s166
    %s184 = sphi 0, %s184
    %s186 = sphi 0, %s184
    %s187 = sphi 0, %s186
    %s201 = sphi 0, %s187
    %s209 = sphi 0, %s211
    %s212 = sphi 0, %s209
    %s213 = sphi 0, %s212
    %s229 = sphi 0, %s213
  $region4: #{_lambda_.1} parent=0 // loop_header_branch
    %17 = sbr.rel (%p15) target = $region8
  $region5: #{_lambda_.1} parent=0 // loop_body
    %s19 = ssub.s32 %s14, 1
    %s20 = ssub.s32 %s14, 2
    %s27 = sadd.s32 1, %s22
    %p28 = scmp.ge.s32.totalorder %s27, 1
    %s29 = scalar_select %p28, 0, %s27
    %s30 = sadd.s32 1, %s21
    %s31 = scalar_select %p28, %s30, %s21
    %p32 = scmp.ge.s32.totalorder %s31, 2
    %s33 = scalar_select %p32, 0, %s31
    %s34 = ssub.s32 %s21, %s33
    %s35 = ssub.s32 %s22, %s29
    %s36 = sor.u32 %s34, %s35
    %p37 = scmp.eq.s32.totalorder %s36, 0
    %s39 = sadd.s32 %s38, 1
    %s40 = scalar_select %p37, %s38, %s39
    %p43 = pneg %p37
    %p44 = scmp.eq.s32.totalorder %s14, 1
    %p45 = por %p43, %p44
    %p46 = scmp.ne.s32.totalorder %s38, %s41
    %p47 = scmp.eq.s32.totalorder %s14, 0
    %p48 = por %p46, %p47
    %p49 = scmp.ne.s32.totalorder %s38, %s41
    %p50 = scmp.eq.s32.totalorder %s19, 1
    %p51 = por %p49, %p50
    %p52 = scmp.ne.s32.totalorder %s41, %s42
    %p53 = scmp.eq.s32.totalorder %s19, 0
    %p54 = por %p52, %p53
    %p55 = scmp.ne.s32.totalorder %s41, %s42
    %p56 = scmp.eq.s32.totalorder %s20, 1
    %p57 = por %p55, %p56
    %p59 = scmp.ne.s32.totalorder %s42, %s58
    %p60 = scmp.eq.s32.totalorder %s20, 0
    %p61 = por %p59, %p60
    %s62 = ssub.s32 %s21, %s33
    %s63 = ssub.s32 %s22, %s29
    %s64 = sor.u32 %s62, %s63
    %p65 = scmp.eq.s32.totalorder %s64, 0
    %s67 = sadd.s32 %s66, 1
    %s68 = scalar_select %p65, %s66, %s67
    %p71 = pneg %p65
    %p72 = scmp.eq.s32.totalorder %s14, 1
    %p73 = por %p71, %p72
    %p74 = scmp.ne.s32.totalorder %s66, %s69
    %p75 = scmp.eq.s32.totalorder %s14, 0
    %p76 = por %p74, %p75
    %p77 = scmp.ne.s32.totalorder %s66, %s69
    %p78 = scmp.eq.s32.totalorder %s19, 1
    %p79 = por %p77, %p78
    %p80 = scmp.ne.s32.totalorder %s69, %s70
    %p81 = scmp.eq.s32.totalorder %s19, 0
    %p82 = por %p80, %p81
    %p83 = scmp.ne.s32.totalorder %s69, %s70
    %p84 = scmp.eq.s32.totalorder %s20, 1
    %p85 = por %p83, %p84
    %p87 = scmp.ne.s32.totalorder %s70, %s86
    %p88 = scmp.eq.s32.totalorder %s20, 0
    %p89 = por %p87, %p88
    %s90 = ssub.s32 %s21, %s33
    %p91 = scmp.eq.s32.totalorder %s90, 0
    %s93 = sadd.s32 %s92, 1
    %s94 = scalar_select %p91, %s92, %s93
    %p97 = pneg %p91
    %p98 = scmp.eq.s32.totalorder %s14, 1
    %p99 = por %p97, %p98
    %p100 = scmp.ne.s32.totalorder %s92, %s95
    %p101 = scmp.eq.s32.totalorder %s14, 0
    %p102 = por %p100, %p101
    %p103 = scmp.ne.s32.totalorder %s92, %s95
    %p104 = scmp.eq.s32.totalorder %s19, 1
    %p105 = por %p103, %p104
    %p106 = scmp.ne.s32.totalorder %s95, %s96
    %p107 = scmp.eq.s32.totalorder %s19, 0
    %p108 = por %p106, %p107
    %p109 = scmp.ne.s32.totalorder %s95, %s96
    %p110 = scmp.eq.s32.totalorder %s20, 1
    %p111 = por %p109, %p110
    %p113 = scmp.ne.s32.totalorder %s96, %s112
    %p114 = scmp.eq.s32.totalorder %s20, 0
    %p115 = por %p113, %p114
    %s116 = ssub.s32 %s21, %s33
    %p117 = scmp.eq.s32.totalorder %s116, 0
    %s119 = sadd.s32 %s118, 1
    %s120 = scalar_select %p117, %s118, %s119
    %p123 = pneg %p117
    %p124 = scmp.eq.s32.totalorder %s14, 1
    %p125 = por %p123, %p124
    %p126 = scmp.ne.s32.totalorder %s118, %s121
    %p127 = scmp.eq.s32.totalorder %s14, 0
    %p128 = por %p126, %p127
    %p129 = scmp.ne.s32.totalorder %s118, %s121
    %p130 = scmp.eq.s32.totalorder %s19, 1
    %p131 = por %p129, %p130
    %p132 = scmp.ne.s32.totalorder %s121, %s122
    %p133 = scmp.eq.s32.totalorder %s19, 0
    %p134 = por %p132, %p133
    %p135 = scmp.ne.s32.totalorder %s121, %s122
    %p136 = scmp.eq.s32.totalorder %s20, 1
    %p137 = por %p135, %p136
    %p139 = scmp.ne.s32.totalorder %s122, %s138
    %p140 = scmp.eq.s32.totalorder %s20, 0
    %p141 = por %p139, %p140
    %s143 = sadd.s32 %s142, 1
    %p146 = scmp.eq.s32.totalorder %s14, 1
    %p147 = scmp.ne.s32.totalorder %s142, %s144
    %p148 = scmp.eq.s32.totalorder %s14, 0
    %p149 = por %p147, %p148
    %p150 = scmp.ne.s32.totalorder %s142, %s144
    %p151 = scmp.eq.s32.totalorder %s19, 1
    %p152 = por %p150, %p151
    %p153 = scmp.ne.s32.totalorder %s144, %s145
    %p154 = scmp.eq.s32.totalorder %s19, 0
    %p155 = por %p153, %p154
    %p156 = scmp.ne.s32.totalorder %s144, %s145
    %p157 = scmp.eq.s32.totalorder %s20, 1
    %p158 = por %p156, %p157
    %p160 = scmp.ne.s32.totalorder %s145, %s159
    %p161 = scmp.eq.s32.totalorder %s20, 0
    %p162 = por %p160, %p161
    %s164 = sadd.s32 %s163, 1
    %p167 = scmp.eq.s32.totalorder %s14, 1
    %p168 = scmp.ne.s32.totalorder %s163, %s165
    %p169 = scmp.eq.s32.totalorder %s14, 0
    %p170 = por %p168, %p169
    %p171 = scmp.ne.s32.totalorder %s163, %s165
    %p172 = scmp.eq.s32.totalorder %s19, 1
    %p173 = por %p171, %p172
    %p174 = scmp.ne.s32.totalorder %s165, %s166
    %p175 = scmp.eq.s32.totalorder %s19, 0
    %p176 = por %p174, %p175
    %p177 = scmp.ne.s32.totalorder %s165, %s166
    %p178 = scmp.eq.s32.totalorder %s20, 1
    %p179 = por %p177, %p178
    %p181 = scmp.ne.s32.totalorder %s166, %s180
    %p182 = scmp.eq.s32.totalorder %s20, 0
    %p183 = por %p181, %p182
    %s185 = sadd.s32 %s184, 1
    %p188 = scmp.eq.s32.totalorder %s14, 1
    %p189 = scmp.ne.s32.totalorder %s184, %s186
    %p190 = scmp.eq.s32.totalorder %s14, 0
    %p191 = por %p189, %p190
    %p192 = scmp.ne.s32.totalorder %s184, %s186
    %p193 = scmp.eq.s32.totalorder %s19, 1
    %p194 = por %p192, %p193
    %p195 = scmp.ne.s32.totalorder %s186, %s187
    %p196 = scmp.eq.s32.totalorder %s19, 0
    %p197 = por %p195, %p196
    %p198 = scmp.ne.s32.totalorder %s186, %s187
    %p199 = scmp.eq.s32.totalorder %s20, 1
    %p200 = por %p198, %p199
    %p202 = scmp.ne.s32.totalorder %s187, %s201
    %p203 = scmp.eq.s32.totalorder %s20, 0
    %p204 = por %p202, %p203
    %s205 = ssub.s32 %s21, %s33
    %s206 = ssub.s32 %s22, %s29
    %s207 = sor.u32 %s205, %s206
    %p208 = scmp.eq.s32.totalorder %s207, 0
    %s210 = sadd.s32 %s209, 1
    %s211 = scalar_select %p208, %s209, %s210
    %p214 = pneg %p208
    %p215 = scmp.eq.s32.totalorder %s14, 1
    %p216 = por %p214, %p215
    %p217 = scmp.ne.s32.totalorder %s209, %s212
    %p218 = scmp.eq.s32.totalorder %s14, 0
    %p219 = por %p217, %p218
    %p220 = scmp.ne.s32.totalorder %s209, %s212
    %p221 = scmp.eq.s32.totalorder %s19, 1
    %p222 = por %p220, %p221
    %p223 = scmp.ne.s32.totalorder %s212, %s213
    %p224 = scmp.eq.s32.totalorder %s19, 0
    %p225 = por %p223, %p224
    %p226 = scmp.ne.s32.totalorder %s212, %s213
    %p227 = scmp.eq.s32.totalorder %s20, 1
    %p228 = por %p226, %p227
    %p230 = scmp.ne.s32.totalorder %s213, %s229
    %p231 = scmp.eq.s32.totalorder %s20, 0
    %p232 = por %p230, %p231
    %p233 = scmp.le.s32.totalorder 1, %s14
    %p234 = scmp.lt.s32.totalorder %s14, 3
    %p235 = pnand %p233, %p234
    %p236 = pneg %p235
    // Predicated region
    $region9: #{_lambda_.1} parent=5 // pred_check
      _
    $region10: #{_lambda_.1} parent=5 // pred_check_branch
      %238 = sbr.rel (%p235) target = $region12
    $region11: #{_lambda_.1} parent=5 // pred_region
      %s239 = ssub.s32 %s14, 1
      // Predicated region
      $region13: #{_lambda_.1} parent=11 // pred_check
        %p240 = pneg %p155
      $region14: #{_lambda_.1} parent=11 // pred_check_branch
        %242 = sbr.rel (%p240) target = $region16
      $region15: #{_lambda_.1} parent=11 // pred_region
        _
      $region16: #{_lambda_.1} parent=11 // pred_fallthru
        _
      // Predicated region
      $region17: #{_lambda_.1} parent=11 // pred_check
        %p243 = pneg %p176
      $region18: #{_lambda_.1} parent=11 // pred_check_branch
        %245 = sbr.rel (%p243) target = $region20
      $region19: #{_lambda_.1} parent=11 // pred_region
        _
      $region20: #{_lambda_.1} parent=11 // pred_fallthru
        _
      // Predicated region
      $region21: #{_lambda_.1} parent=11 // pred_check
        %p246 = pneg %p197
      $region22: #{_lambda_.1} parent=11 // pred_check_branch
        %248 = sbr.rel (%p246) target = $region24
      $region23: #{_lambda_.1} parent=11 // pred_region
        _
      $region24: #{_lambda_.1} parent=11 // pred_fallthru
        _
    $region12: #{_lambda_.1} parent=5 // pred_fallthru
      _
    %p249 = scmp.lt.s32.totalorder %s14, 2
    // Predicated region
    $region25: #{_lambda_.1} parent=5 // pred_check
      %p250 = pneg %p249
    $region26: #{_lambda_.1} parent=5 // pred_check_branch
      %252 = sbr.rel (%p250) target = $region28
    $region27: #{_lambda_.1} parent=5 // pred_region
      // Predicated region
      $region29: #{_lambda_.1} parent=27 // pred_check
        %p253 = pneg %p48
      $region30: #{_lambda_.1} parent=27 // pred_check_branch
        %255 = sbr.rel (%p253) target = $region32
      $region31: #{_lambda_.1} parent=27 // pred_region
        %s256 = smul.u32 4, %s22
        %p257 = scmp.lt.s32.totalorder %s21, 1
        %s258 = scalar_select %p257, %s21, 1
        %p259 = scmp.lt.s32.totalorder %s256, 3
        %s260 = scalar_select %p259, %s256, 3
        %s261 = smul.addr %s258, 4
        %s262 = sadd.s32 %s260, %s261
        %s263 = smul.addr %s262, 4
        %s264 = scalar_lea.vmem %s0, %s263
        %s265 = smul.u32 4, %s22
      $region32: #{_lambda_.1} parent=27 // pred_fallthru
        _
      // Predicated region
      $region33: #{_lambda_.1} parent=27 // pred_check
        %p266 = pneg %p76
      $region34: #{_lambda_.1} parent=27 // pred_check_branch
        %268 = sbr.rel (%p266) target = $region36
      $region35: #{_lambda_.1} parent=27 // pred_region
        %s269 = smul.u32 4, %s22
        %p270 = scmp.lt.s32.totalorder %s21, 1
        %s271 = scalar_select %p270, %s21, 1
        %p272 = scmp.lt.s32.totalorder %s269, 3
        %s273 = scalar_select %p272, %s269, 3
        %s274 = smul.addr %s271, 4
        %s275 = sadd.s32 %s273, %s274
        %s276 = smul.addr %s275, 4
        %s277 = scalar_lea.vmem %s1, %s276
        %s278 = smul.u32 4, %s22
      $region36: #{_lambda_.1} parent=27 // pred_fallthru
        _
      // Predicated region
      $region37: #{_lambda_.1} parent=27 // pred_check
        %p279 = pneg %p102
      $region38: #{_lambda_.1} parent=27 // pred_check_branch
        %281 = sbr.rel (%p279) target = $region40
      $region39: #{_lambda_.1} parent=27 // pred_region
        %p282 = scmp.lt.s32.totalorder %s21, 1
        %s283 = scalar_select %p282, %s21, 1
        %s284 = smul.addr %s283, 4
        %s285 = scalar_lea.vmem %s2, %s284
      $region40: #{_lambda_.1} parent=27 // pred_fallthru
        _
      // Predicated region
      $region41: #{_lambda_.1} parent=27 // pred_check
        %p286 = pneg %p128
      $region42: #{_lambda_.1} parent=27 // pred_check_branch
        %288 = sbr.rel (%p286) target = $region44
      $region43: #{_lambda_.1} parent=27 // pred_region
        %p289 = scmp.lt.s32.totalorder %s21, 1
        %s290 = scalar_select %p289, %s21, 1
        %s291 = smul.addr %s290, 4
        %s292 = scalar_lea.vmem %s3, %s291
      $region44: #{_lambda_.1} parent=27 // pred_fallthru
        _
    $region28: #{_lambda_.1} parent=5 // pred_fallthru
      _
    %p293 = scmp.le.s32.totalorder 1, %s14
    %p294 = scmp.lt.s32.totalorder %s14, 3
    %p295 = pnand %p293, %p294
    %p296 = pneg %p295
    // Predicated region
    $region45: #{_lambda_.1} parent=5 // pred_check
      _
    $region46: #{_lambda_.1} parent=5 // pred_check_branch
      %298 = sbr.rel (%p295) target = $region48
    $region47: #{_lambda_.1} parent=5 // pred_region
      %s299 = ssub.s32 %s14, 1
      %s300 = smul.u32 4, %s24
      %p301 = scmp.lt.s32.totalorder %s23, 1
      %s302 = scalar_select %p301, %s23, 1
      %p303 = scmp.lt.s32.totalorder %s300, 3
      %s304 = scalar_select %p303, %s300, 3
      %s305 = smul.addr %s302, 4
      %s306 = sadd.s32 %s304, %s305
      %s307 = smul.addr %s306, 4
      %s308 = scalar_lea.vmem %s0, %s307
      %p309 = pneg %p54
      %p310 = pneg %p51
      %s311 = smul.u32 4, %s24
      %p312 = scmp.lt.s32.totalorder %s23, 1
      %s313 = scalar_select %p312, %s23, 1
      %p314 = scmp.lt.s32.totalorder %s311, 3
      %s315 = scalar_select %p314, %s311, 3
      %s316 = smul.addr %s313, 4
      %s317 = sadd.s32 %s315, %s316
      %s318 = smul.addr %s317, 4
      %s319 = scalar_lea.vmem %s1, %s318
      %p320 = pneg %p82
      %p321 = pneg %p79
      %p322 = scmp.lt.s32.totalorder %s23, 1
      %s323 = scalar_select %p322, %s23, 1
      %s324 = smul.addr %s323, 4
      %s325 = scalar_lea.vmem %s2, %s324
      %p326 = pneg %p108
      %p327 = pneg %p105
      %p328 = scmp.lt.s32.totalorder %s23, 1
      %s329 = scalar_select %p328, %s23, 1
      %s330 = smul.addr %s329, 4
      %s331 = scalar_lea.vmem %s3, %s330
      %p332 = pneg %p134
      %p333 = pneg %p131
      %p334 = pneg %p155
      %p335 = pneg %p152
      %p336 = pneg %p176
      %p337 = pneg %p173
      %p338 = pneg %p197
      %p339 = pneg %p194
      %p340 = pneg %p225
      %p341 = pneg %p222
      %s342 = smul.u32 4, %s24
      %p343 = scmp.lt.s32.totalorder %s23, 1
      %s344 = scalar_select %p343, %s23, 1
      %p345 = scmp.lt.s32.totalorder %s342, 3
      %s346 = scalar_select %p345, %s342, 3
      %s347 = smul.addr %s344, 4
      %s348 = sadd.s32 %s346, %s347
      %s349 = smul.addr %s348, 4
      %s350 = scalar_lea.vmem %s7, %s349
      %s351 = smul.u32 4, %s24
      %p352 = scmp.lt.s32.totalorder %s23, 1
      %s353 = scalar_select %p352, %s23, 1
      %p354 = scmp.lt.s32.totalorder %s351, 3
      %s355 = scalar_select %p354, %s351, 3
      %s356 = smul.addr %s353, 4
      %s357 = sadd.s32 %s355, %s356
      %s358 = smul.addr %s357, 4
      %s359 = scalar_lea.vmem %s0, %s358
      %s360 = smul.u32 4, %s24
      %s361 = smul.u32 4, %s24
      %p362 = scmp.lt.s32.totalorder %s23, 1
      %s363 = scalar_select %p362, %s23, 1
      %p364 = scmp.lt.s32.totalorder %s361, 3
      %s365 = scalar_select %p364, %s361, 3
      %s366 = smul.addr %s363, 4
      %s367 = sadd.s32 %s365, %s366
      %s368 = smul.addr %s367, 4
      %s369 = scalar_lea.vmem %s1, %s368
      %s370 = smul.u32 4, %s24
      %p371 = scmp.lt.s32.totalorder %s23, 1
      %s372 = scalar_select %p371, %s23, 1
      %s373 = smul.addr %s372, 4
      %s374 = scalar_lea.vmem %s2, %s373
      %p375 = scmp.lt.s32.totalorder %s23, 1
      %s376 = scalar_select %p375, %s23, 1
      %s377 = smul.addr %s376, 4
      %s378 = scalar_lea.vmem %s3, %s377
      %s379 = smul.u32 4, %s24
      %p380 = scmp.lt.s32.totalorder %s23, 1
      %s381 = scalar_select %p380, %s23, 1
      %p382 = scmp.lt.s32.totalorder %s379, 3
      %s383 = scalar_select %p382, %s379, 3
      %s384 = smul.addr %s381, 4
      %s385 = sadd.s32 %s383, %s384
      %s386 = smul.addr %s385, 4
      %s387 = scalar_lea.vmem %s7, %s386
      %s388 = smul.u32 4, %s24
      %v389 = vld [vmem:[%s359] sm:$0xff]
      %v390 = vld [vmem:[%s359 + $0x8] sm:$0xff]
      %v391 = vld [vmem:[%s369] sm:$0xff]
      %v392 = vld [vmem:[%s369 + $0x8] sm:$0xff]
      %v393 = vld [vmem:[%s374] sm:$0xf]
      %v394 = vld [vmem:[%s378] sm:$0xf]
      %397 = vst [vmem:[#allocation1] ss:$2 sm:$0xff] %v391
      %s398 = scalar_lea.vmem [#allocation1], 16
      %399 = vst [vmem:[%s398] ss:$2 sm:$0xff] %v392
      %v400 = vld.sshfl [vmem:[#allocation1] sm:$0xff pattern:$0x75316420]
      %v401 = vld.sshfl [vmem:[#allocation1 + $0x8] sm:$0xff pattern:$0x75316420]
      %v402 = vld.sshfl [vmem:[#allocation1 + $0x10] sm:$0xff pattern:$0x75316420]
      %v403 = vld.sshfl [vmem:[#allocation1 + $0x18] sm:$0xff pattern:$0x75316420]
      %vm404 = vcmask 31744
      %v406 = vsel %vm404, %v394, 0
      %vm408 = vcmask 1043456
      %v409 = vsel %vm408, %v400, 0
      %v411 = vsel %vm408, %v401, 0
      %v413 = vsel %vm408, %v402, 0
      %v415 = vsel %vm408, %v403, 0
      %417 = vmatpush.msra.mxu0 0.0
      %418 = vmatpush.msra.mxu0 0.0
      %419 = vmatpush.msra.mxu0 0.0
      %420 = vmatpush.msra.mxu0 0.0
      %421 = vmatpush.msra.mxu0 0.0
      %422 = vmatpush.msra.mxu0 0.0
      %423 = vmatpush.msra.mxu0 0.0
      %424 = vmatpush.msra.mxu0 0.0
      %425 = vmatpush.msra.mxu0 0.0
      %426 = vmatpush.msra.mxu0 0.0
      %427 = vmatpush.msra.mxu0 0.0
      %428 = vmatpush.msra.mxu0 0.0
      %429 = vmatpush.msra.mxu0 0.0
      %430 = vmatpush.msra.mxu0 0.0
      %431 = vmatpush.msra.mxu0 0.0
      %432 = vmatpush.msra.mxu0 %v409
      %433 = vmatmul.f32.gmra.mxu0 %v406
      %v434 = vpop.f32.mrf.mxu0
      %v435 = vadd.f32 0.0, %v434
      %436 = vdwg.mxu0
      %437 = vmatpush.msra.mxu0 0.0
      %438 = vmatpush.msra.mxu0 0.0
      %439 = vmatpush.msra.mxu0 0.0
      %440 = vmatpush.msra.mxu0 0.0
      %441 = vmatpush.msra.mxu0 0.0
      %442 = vmatpush.msra.mxu0 0.0
      %443 = vmatpush.msra.mxu0 0.0
      %444 = vmatpush.msra.mxu0 0.0
      %445 = vmatpush.msra.mxu0 0.0
      %446 = vmatpush.msra.mxu0 0.0
      %447 = vmatpush.msra.mxu0 0.0
      %448 = vmatpush.msra.mxu0 0.0
      %449 = vmatpush.msra.mxu0 0.0
      %450 = vmatpush.msra.mxu0 0.0
      %451 = vmatpush.msra.mxu0 0.0
      %452 = vmatpush.msra.mxu0 %v411
      %453 = vmatmul.f32.gmra.mxu0 %v406
      %v454 = vpop.f32.mrf.mxu0
      %v455 = vadd.f32 0.0, %v454
      %456 = vdwg.mxu0
      %457 = vmatpush.msra.mxu0 0.0
      %458 = vmatpush.msra.mxu0 0.0
      %459 = vmatpush.msra.mxu0 0.0
      %460 = vmatpush.msra.mxu0 0.0
      %461 = vmatpush.msra.mxu0 0.0
      %462 = vmatpush.msra.mxu0 0.0
      %463 = vmatpush.msra.mxu0 0.0
      %464 = vmatpush.msra.mxu0 0.0
      %465 = vmatpush.msra.mxu0 0.0
      %466 = vmatpush.msra.mxu0 0.0
      %467 = vmatpush.msra.mxu0 0.0
      %468 = vmatpush.msra.mxu0 0.0
      %469 = vmatpush.msra.mxu0 0.0
      %470 = vmatpush.msra.mxu0 0.0
      %471 = vmatpush.msra.mxu0 0.0
      %472 = vmatpush.msra.mxu0 %v413
      %473 = vmatmul.f32.gmra.mxu0 %v406
      %v474 = vpop.f32.mrf.mxu0
      %v475 = vadd.f32 0.0, %v474
      %476 = vdwg.mxu0
      %477 = vmatpush.msra.mxu0 0.0
      %478 = vmatpush.msra.mxu0 0.0
      %479 = vmatpush.msra.mxu0 0.0
      %480 = vmatpush.msra.mxu0 0.0
      %481 = vmatpush.msra.mxu0 0.0
      %482 = vmatpush.msra.mxu0 0.0
      %483 = vmatpush.msra.mxu0 0.0
      %484 = vmatpush.msra.mxu0 0.0
      %485 = vmatpush.msra.mxu0 0.0
      %486 = vmatpush.msra.mxu0 0.0
      %487 = vmatpush.msra.mxu0 0.0
      %488 = vmatpush.msra.mxu0 0.0
      %489 = vmatpush.msra.mxu0 0.0
      %490 = vmatpush.msra.mxu0 0.0
      %491 = vmatpush.msra.mxu0 0.0
      %492 = vmatpush.msra.mxu0 %v415
      %493 = vmatmul.f32.gmra.mxu0 %v406
      %v494 = vpop.f32.mrf.mxu0
      %v495 = vadd.f32 0.0, %v494
      %496 = vdwg.mxu0
      %499 = vst [vmem:[#allocation1] ss:$2 sm:$0xff] %v389
      %s500 = scalar_lea.vmem [#allocation1], 16
      %501 = vst [vmem:[%s500] ss:$2 sm:$0xff] %v390
      %v502 = vld.sshfl [vmem:[#allocation1] sm:$0xff pattern:$0x75316420]
      %v503 = vld.sshfl [vmem:[#allocation1 + $0x8] sm:$0xff pattern:$0x75316420]
      %v504 = vld.sshfl [vmem:[#allocation1 + $0x10] sm:$0xff pattern:$0x75316420]
      %v505 = vld.sshfl [vmem:[#allocation1 + $0x18] sm:$0xff pattern:$0x75316420]
      %v507 = vsel %vm404, %v393, 0
      %v509 = vsel %vm408, %v502, 0
      %v511 = vsel %vm408, %v503, 0
      %v513 = vsel %vm408, %v504, 0
      %v515 = vsel %vm408, %v505, 0
      %517 = vmatpush.msra.mxu0 0.0
      %518 = vmatpush.msra.mxu0 0.0
      %519 = vmatpush.msra.mxu0 0.0
      %520 = vmatpush.msra.mxu0 0.0
      %521 = vmatpush.msra.mxu0 0.0
      %522 = vmatpush.msra.mxu0 0.0
      %523 = vmatpush.msra.mxu0 0.0
      %524 = vmatpush.msra.mxu0 0.0
      %525 = vmatpush.msra.mxu0 0.0
      %526 = vmatpush.msra.mxu0 0.0
      %527 = vmatpush.msra.mxu0 0.0
      %528 = vmatpush.msra.mxu0 0.0
      %529 = vmatpush.msra.mxu0 0.0
      %530 = vmatpush.msra.mxu0 0.0
      %531 = vmatpush.msra.mxu0 0.0
      %532 = vmatpush.msra.mxu0 %v509
      %533 = vmatmul.f32.gmra.mxu0 %v507
      %v534 = vpop.f32.mrf.mxu0
      %v535 = vadd.f32 %v435, %v534
      %536 = vdwg.mxu0
      %537 = vmatpush.msra.mxu0 0.0
      %538 = vmatpush.msra.mxu0 0.0
      %539 = vmatpush.msra.mxu0 0.0
      %540 = vmatpush.msra.mxu0 0.0
      %541 = vmatpush.msra.mxu0 0.0
      %542 = vmatpush.msra.mxu0 0.0
      %543 = vmatpush.msra.mxu0 0.0
      %544 = vmatpush.msra.mxu0 0.0
      %545 = vmatpush.msra.mxu0 0.0
      %546 = vmatpush.msra.mxu0 0.0
      %547 = vmatpush.msra.mxu0 0.0
      %548 = vmatpush.msra.mxu0 0.0
      %549 = vmatpush.msra.mxu0 0.0
      %550 = vmatpush.msra.mxu0 0.0
      %551 = vmatpush.msra.mxu0 0.0
      %552 = vmatpush.msra.mxu0 %v511
      %553 = vmatmul.f32.gmra.mxu0 %v507
      %v554 = vpop.f32.mrf.mxu0
      %v555 = vadd.f32 %v455, %v554
      %556 = vdwg.mxu0
      %557 = vmatpush.msra.mxu0 0.0
      %558 = vmatpush.msra.mxu0 0.0
      %559 = vmatpush.msra.mxu0 0.0
      %560 = vmatpush.msra.mxu0 0.0
      %561 = vmatpush.msra.mxu0 0.0
      %562 = vmatpush.msra.mxu0 0.0
      %563 = vmatpush.msra.mxu0 0.0
      %564 = vmatpush.msra.mxu0 0.0
      %565 = vmatpush.msra.mxu0 0.0
      %566 = vmatpush.msra.mxu0 0.0
      %567 = vmatpush.msra.mxu0 0.0
      %568 = vmatpush.msra.mxu0 0.0
      %569 = vmatpush.msra.mxu0 0.0
      %570 = vmatpush.msra.mxu0 0.0
      %571 = vmatpush.msra.mxu0 0.0
      %572 = vmatpush.msra.mxu0 %v513
      %573 = vmatmul.f32.gmra.mxu0 %v507
      %v574 = vpop.f32.mrf.mxu0
      %v575 = vadd.f32 %v475, %v574
      %576 = vdwg.mxu0
      %577 = vmatpush.msra.mxu0 0.0
      %578 = vmatpush.msra.mxu0 0.0
      %579 = vmatpush.msra.mxu0 0.0
      %580 = vmatpush.msra.mxu0 0.0
      %581 = vmatpush.msra.mxu0 0.0
      %582 = vmatpush.msra.mxu0 0.0
      %583 = vmatpush.msra.mxu0 0.0
      %584 = vmatpush.msra.mxu0 0.0
      %585 = vmatpush.msra.mxu0 0.0
      %586 = vmatpush.msra.mxu0 0.0
      %587 = vmatpush.msra.mxu0 0.0
      %588 = vmatpush.msra.mxu0 0.0
      %589 = vmatpush.msra.mxu0 0.0
      %590 = vmatpush.msra.mxu0 0.0
      %591 = vmatpush.msra.mxu0 0.0
      %592 = vmatpush.msra.mxu0 %v515
      %593 = vmatmul.f32.gmra.mxu0 %v507
      %v594 = vpop.f32.mrf.mxu0
      %v595 = vadd.f32 %v495, %v594
      %596 = vdwg.mxu0
      %v597 = vld [vmem:[%s4] sm:$0x1]
      %v598 = vld [vmem:[%s5] sm:$0x1]
      %599 = vst [vmem:[#allocation1] ss:$2 sm:$0xff] %v391
      %s600 = scalar_lea.vmem [#allocation1], 16
      %601 = vst [vmem:[%s600] ss:$2 sm:$0xff] %v392
      %v602 = vld.sshfl [vmem:[#allocation1] sm:$0xff pattern:$0x75316420]
      %v603 = vld.sshfl [vmem:[#allocation1 + $0x8] sm:$0xff pattern:$0x75316420]
      %v604 = vld.sshfl [vmem:[#allocation1 + $0x10] sm:$0xff pattern:$0x75316420]
      %v605 = vld.sshfl [vmem:[#allocation1 + $0x18] sm:$0xff pattern:$0x75316420]
      %v607 = vsel %vm404, %v598, 0
      %v609 = vsel %vm408, %v602, 0
      %v611 = vsel %vm408, %v603, 0
      %v613 = vsel %vm408, %v604, 0
      %v615 = vsel %vm408, %v605, 0
      %617 = vmatpush.msra.mxu0 0.0
      %618 = vmatpush.msra.mxu0 0.0
      %619 = vmatpush.msra.mxu0 0.0
      %620 = vmatpush.msra.mxu0 0.0
      %621 = vmatpush.msra.mxu0 0.0
      %622 = vmatpush.msra.mxu0 0.0
      %623 = vmatpush.msra.mxu0 0.0
      %624 = vmatpush.msra.mxu0 0.0
      %625 = vmatpush.msra.mxu0 0.0
      %626 = vmatpush.msra.mxu0 0.0
      %627 = vmatpush.msra.mxu0 0.0
      %628 = vmatpush.msra.mxu0 0.0
      %629 = vmatpush.msra.mxu0 0.0
      %630 = vmatpush.msra.mxu0 0.0
      %631 = vmatpush.msra.mxu0 0.0
      %632 = vmatpush.msra.mxu0 %v609
      %633 = vmatmul.f32.gmra.mxu0 %v607
      %v634 = vpop.f32.mrf.mxu0
      %v635 = vadd.f32 0.0, %v634
      %636 = vdwg.mxu0
      %637 = vmatpush.msra.mxu0 0.0
      %638 = vmatpush.msra.mxu0 0.0
      %639 = vmatpush.msra.mxu0 0.0
      %640 = vmatpush.msra.mxu0 0.0
      %641 = vmatpush.msra.mxu0 0.0
      %642 = vmatpush.msra.mxu0 0.0
      %643 = vmatpush.msra.mxu0 0.0
      %644 = vmatpush.msra.mxu0 0.0
      %645 = vmatpush.msra.mxu0 0.0
      %646 = vmatpush.msra.mxu0 0.0
      %647 = vmatpush.msra.mxu0 0.0
      %648 = vmatpush.msra.mxu0 0.0
      %649 = vmatpush.msra.mxu0 0.0
      %650 = vmatpush.msra.mxu0 0.0
      %651 = vmatpush.msra.mxu0 0.0
      %652 = vmatpush.msra.mxu0 %v611
      %653 = vmatmul.f32.gmra.mxu0 %v607
      %v654 = vpop.f32.mrf.mxu0
      %v655 = vadd.f32 0.0, %v654
      %656 = vdwg.mxu0
      %657 = vmatpush.msra.mxu0 0.0
      %658 = vmatpush.msra.mxu0 0.0
      %659 = vmatpush.msra.mxu0 0.0
      %660 = vmatpush.msra.mxu0 0.0
      %661 = vmatpush.msra.mxu0 0.0
      %662 = vmatpush.msra.mxu0 0.0
      %663 = vmatpush.msra.mxu0 0.0
      %664 = vmatpush.msra.mxu0 0.0
      %665 = vmatpush.msra.mxu0 0.0
      %666 = vmatpush.msra.mxu0 0.0
      %667 = vmatpush.msra.mxu0 0.0
      %668 = vmatpush.msra.mxu0 0.0
      %669 = vmatpush.msra.mxu0 0.0
      %670 = vmatpush.msra.mxu0 0.0
      %671 = vmatpush.msra.mxu0 0.0
      %672 = vmatpush.msra.mxu0 %v613
      %673 = vmatmul.f32.gmra.mxu0 %v607
      %v674 = vpop.f32.mrf.mxu0
      %v675 = vadd.f32 0.0, %v674
      %676 = vdwg.mxu0
      %677 = vmatpush.msra.mxu0 0.0
      %678 = vmatpush.msra.mxu0 0.0
      %679 = vmatpush.msra.mxu0 0.0
      %680 = vmatpush.msra.mxu0 0.0
      %681 = vmatpush.msra.mxu0 0.0
      %682 = vmatpush.msra.mxu0 0.0
      %683 = vmatpush.msra.mxu0 0.0
      %684 = vmatpush.msra.mxu0 0.0
      %685 = vmatpush.msra.mxu0 0.0
      %686 = vmatpush.msra.mxu0 0.0
      %687 = vmatpush.msra.mxu0 0.0
      %688 = vmatpush.msra.mxu0 0.0
      %689 = vmatpush.msra.mxu0 0.0
      %690 = vmatpush.msra.mxu0 0.0
      %691 = vmatpush.msra.mxu0 0.0
      %692 = vmatpush.msra.mxu0 %v615
      %693 = vmatmul.f32.gmra.mxu0 %v607
      %v694 = vpop.f32.mrf.mxu0
      %v695 = vadd.f32 0.0, %v694
      %696 = vdwg.mxu0
      %697 = vst [vmem:[#allocation1] ss:$2 sm:$0xff] %v389
      %s698 = scalar_lea.vmem [#allocation1], 16
      %699 = vst [vmem:[%s698] ss:$2 sm:$0xff] %v390
      %v700 = vld.sshfl [vmem:[#allocation1] sm:$0xff pattern:$0x75316420]
      %v701 = vld.sshfl [vmem:[#allocation1 + $0x8] sm:$0xff pattern:$0x75316420]
      %v702 = vld.sshfl [vmem:[#allocation1 + $0x10] sm:$0xff pattern:$0x75316420]
      %v703 = vld.sshfl [vmem:[#allocation1 + $0x18] sm:$0xff pattern:$0x75316420]
      %v705 = vsel %vm404, %v597, 0
      %v707 = vsel %vm408, %v700, 0
      %v709 = vsel %vm408, %v701, 0
      %v711 = vsel %vm408, %v702, 0
      %v713 = vsel %vm408, %v703, 0
      %715 = vmatpush.msra.mxu0 0.0
      %716 = vmatpush.msra.mxu0 0.0
      %717 = vmatpush.msra.mxu0 0.0
      %718 = vmatpush.msra.mxu0 0.0
      %719 = vmatpush.msra.mxu0 0.0
      %720 = vmatpush.msra.mxu0 0.0
      %721 = vmatpush.msra.mxu0 0.0
      %722 = vmatpush.msra.mxu0 0.0
      %723 = vmatpush.msra.mxu0 0.0
      %724 = vmatpush.msra.mxu0 0.0
      %725 = vmatpush.msra.mxu0 0.0
      %726 = vmatpush.msra.mxu0 0.0
      %727 = vmatpush.msra.mxu0 0.0
      %728 = vmatpush.msra.mxu0 0.0
      %729 = vmatpush.msra.mxu0 0.0
      %730 = vmatpush.msra.mxu0 %v707
      %731 = vmatmul.f32.gmra.mxu0 %v705
      %v732 = vpop.f32.mrf.mxu0
      %v733 = vadd.f32 %v635, %v732
      %734 = vdwg.mxu0
      %735 = vmatpush.msra.mxu0 0.0
      %736 = vmatpush.msra.mxu0 0.0
      %737 = vmatpush.msra.mxu0 0.0
      %738 = vmatpush.msra.mxu0 0.0
      %739 = vmatpush.msra.mxu0 0.0
      %740 = vmatpush.msra.mxu0 0.0
      %741 = vmatpush.msra.mxu0 0.0
      %742 = vmatpush.msra.mxu0 0.0
      %743 = vmatpush.msra.mxu0 0.0
      %744 = vmatpush.msra.mxu0 0.0
      %745 = vmatpush.msra.mxu0 0.0
      %746 = vmatpush.msra.mxu0 0.0
      %747 = vmatpush.msra.mxu0 0.0
      %748 = vmatpush.msra.mxu0 0.0
      %749 = vmatpush.msra.mxu0 0.0
      %750 = vmatpush.msra.mxu0 %v709
      %751 = vmatmul.f32.gmra.mxu0 %v705
      %v752 = vpop.f32.mrf.mxu0
      %v753 = vadd.f32 %v655, %v752
      %754 = vdwg.mxu0
      %755 = vmatpush.msra.mxu0 0.0
      %756 = vmatpush.msra.mxu0 0.0
      %757 = vmatpush.msra.mxu0 0.0
      %758 = vmatpush.msra.mxu0 0.0
      %759 = vmatpush.msra.mxu0 0.0
      %760 = vmatpush.msra.mxu0 0.0
      %761 = vmatpush.msra.mxu0 0.0
      %762 = vmatpush.msra.mxu0 0.0
      %763 = vmatpush.msra.mxu0 0.0
      %764 = vmatpush.msra.mxu0 0.0
      %765 = vmatpush.msra.mxu0 0.0
      %766 = vmatpush.msra.mxu0 0.0
      %767 = vmatpush.msra.mxu0 0.0
      %768 = vmatpush.msra.mxu0 0.0
      %769 = vmatpush.msra.mxu0 0.0
      %770 = vmatpush.msra.mxu0 %v711
      %771 = vmatmul.f32.gmra.mxu0 %v705
      %v772 = vpop.f32.mrf.mxu0
      %v773 = vadd.f32 %v675, %v772
      %774 = vdwg.mxu0
      %775 = vmatpush.msra.mxu0 0.0
      %776 = vmatpush.msra.mxu0 0.0
      %777 = vmatpush.msra.mxu0 0.0
      %778 = vmatpush.msra.mxu0 0.0
      %779 = vmatpush.msra.mxu0 0.0
      %780 = vmatpush.msra.mxu0 0.0
      %781 = vmatpush.msra.mxu0 0.0
      %782 = vmatpush.msra.mxu0 0.0
      %783 = vmatpush.msra.mxu0 0.0
      %784 = vmatpush.msra.mxu0 0.0
      %785 = vmatpush.msra.mxu0 0.0
      %786 = vmatpush.msra.mxu0 0.0
      %787 = vmatpush.msra.mxu0 0.0
      %788 = vmatpush.msra.mxu0 0.0
      %789 = vmatpush.msra.mxu0 0.0
      %790 = vmatpush.msra.mxu0 %v713
      %791 = vmatmul.f32.gmra.mxu0 %v705
      %v792 = vpop.f32.mrf.mxu0
      %v793 = vadd.f32 %v695, %v792
      %794 = vdwg.mxu0
      %s795 = sld [smem:[#allocation2]]
      %v796 = vstv %s795
      %v797 = vadd.f32 %v733, %v796
      %v798 = vadd.f32 %v753, %v796
      %v799 = vadd.f32 %v773, %v796
      %v800 = vadd.f32 %v793, %v796
      %v801 = vxor.u32 %v797, 2147483648
      %v802 = vxor.u32 %v798, 2147483648
      %v803 = vxor.u32 %v799, 2147483648
      %v804 = vxor.u32 %v800, 2147483648
      %v805 = vmul.f32 %v801, 1.442695
      %v806 = vpow.pop %v805
      %v807 = vmul.f32 %v802, 1.442695
      %v808 = vpow.pop %v807
      %v809 = vmul.f32 %v803, 1.442695
      %v810 = vpow.pop %v809
      %v811 = vmul.f32 %v804, 1.442695
      %v812 = vpow.pop %v811
      %v813 = vadd.f32 %v806, 1.0
      %v814 = vadd.f32 %v808, 1.0
      %v815 = vadd.f32 %v810, 1.0
      %v816 = vadd.f32 %v812, 1.0
      %v817 = vrcp.pop %v813
      %v818 = vmul.f32 %v813, %v817
      %v819 = vsub.f32 1.0, %v818
      %v820 = vmul.f32 %v817, %v819
      %v821 = vadd.f32 %v817, %v820
      %vm822 = vweird.f32 %v813
      %vm823 = vweird.f32 %v817
      %vm824 = vmor %vm822, %vm823
      %v825 = vsel %vm824, %v817, %v821
      %v826 = vand.u32 2147483647, %v813
      %vm827 = vcmp.eq.f32.partialorder %v826, 8.507059e+37
      %v828 = vand.u32 %v813, 2147483648
      %v829 = vor.u32 1.1754944e-38, %v828
      %v830 = vsel %vm827, %v829, %v825
      %v831 = vmul.f32 1.0, %v830
      %v832 = vrcp.pop %v814
      %v833 = vmul.f32 %v814, %v832
      %v834 = vsub.f32 1.0, %v833
      %v835 = vmul.f32 %v832, %v834
      %v836 = vadd.f32 %v832, %v835
      %vm837 = vweird.f32 %v814
      %vm838 = vweird.f32 %v832
      %vm839 = vmor %vm837, %vm838
      %v840 = vsel %vm839, %v832, %v836
      %v841 = vand.u32 2147483647, %v814
      %vm842 = vcmp.eq.f32.partialorder %v841, 8.507059e+37
      %v843 = vand.u32 %v814, 2147483648
      %v844 = vor.u32 1.1754944e-38, %v843
      %v845 = vsel %vm842, %v844, %v840
      %v846 = vmul.f32 1.0, %v845
      %v847 = vrcp.pop %v815
      %v848 = vmul.f32 %v815, %v847
      %v849 = vsub.f32 1.0, %v848
      %v850 = vmul.f32 %v847, %v849
      %v851 = vadd.f32 %v847, %v850
      %vm852 = vweird.f32 %v815
      %vm853 = vweird.f32 %v847
      %vm854 = vmor %vm852, %vm853
      %v855 = vsel %vm854, %v847, %v851
      %v856 = vand.u32 2147483647, %v815
      %vm857 = vcmp.eq.f32.partialorder %v856, 8.507059e+37
      %v858 = vand.u32 %v815, 2147483648
      %v859 = vor.u32 1.1754944e-38, %v858
      %v860 = vsel %vm857, %v859, %v855
      %v861 = vmul.f32 1.0, %v860
      %v862 = vrcp.pop %v816
      %v863 = vmul.f32 %v816, %v862
      %v864 = vsub.f32 1.0, %v863
      %v865 = vmul.f32 %v862, %v864
      %v866 = vadd.f32 %v862, %v865
      %vm867 = vweird.f32 %v816
      %vm868 = vweird.f32 %v862
      %vm869 = vmor %vm867, %vm868
      %v870 = vsel %vm869, %v862, %v866
      %v871 = vand.u32 2147483647, %v816
      %vm872 = vcmp.eq.f32.partialorder %v871, 8.507059e+37
      %v873 = vand.u32 %v816, 2147483648
      %v874 = vor.u32 1.1754944e-38, %v873
      %v875 = vsel %vm872, %v874, %v870
      %v876 = vmul.f32 1.0, %v875
      %v877 = vperm.slane %v831, 0
      %v878 = vperm.slane %v846, 0
      %v879 = vperm.slane %v861, 0
      %v880 = vperm.slane %v876, 0
      %v881 = vmul.f32 %v535, %v877
      %v882 = vmul.f32 %v555, %v878
      %v883 = vmul.f32 %v575, %v879
      %v884 = vmul.f32 %v595, %v880
      %v889 = vrot.slane %v882, 4
      %v890 = vrot.slane %v884, 4
      %v891 = vsel %vm408, %v881, %v889
      %v892 = vsel %vm408, %v883, %v890
      %895 = vst [vmem:[%s387] sm:$0xff] %v891
      %896 = vst [vmem:[%s387 + $0x8] sm:$0xff] %v892
      %s897 = smul.u32 4, %s24
      %p898 = scmp.lt.s32.totalorder %s23, 1
      %s899 = scalar_select %p898, %s23, 1
      %p900 = scmp.lt.s32.totalorder %s897, 3
      %s901 = scalar_select %p900, %s897, 3
      %s902 = smul.addr %s899, 4
      %s903 = sadd.s32 %s901, %s902
      %s904 = smul.addr %s903, 4
      %s905 = scalar_lea.vmem %s7, %s904
      // Predicated region
      $region49: #{_lambda_.1} parent=47 // pred_check
        %p906 = pneg %p222
      $region50: #{_lambda_.1} parent=47 // pred_check_branch
        %908 = sbr.rel (%p906) target = $region52
      $region51: #{_lambda_.1} parent=47 // pred_region
        %s909 = smul.u32 4, %s24
      $region52: #{_lambda_.1} parent=47 // pred_fallthru
        _
    $region48: #{_lambda_.1} parent=5 // pred_fallthru
      _
    %p910 = scmp.le.s32.totalorder 2, %s14
    // Predicated region
    $region53: #{_lambda_.1} parent=5 // pred_check
      %p911 = pneg %p910
    $region54: #{_lambda_.1} parent=5 // pred_check_branch
      %913 = sbr.rel (%p911) target = $region56
    $region55: #{_lambda_.1} parent=5 // pred_region
      %s914 = ssub.s32 %s14, 2
      // Predicated region
      $region57: #{_lambda_.1} parent=55 // pred_check
        %p915 = pneg %p228
      $region58: #{_lambda_.1} parent=55 // pred_check_branch
        %917 = sbr.rel (%p915) target = $region60
      $region59: #{_lambda_.1} parent=55 // pred_region
        %s918 = smul.u32 4, %s26
        %p919 = scmp.lt.s32.totalorder %s25, 1
        %s920 = scalar_select %p919, %s25, 1
        %p921 = scmp.lt.s32.totalorder %s918, 3
        %s922 = scalar_select %p921, %s918, 3
        %s923 = smul.addr %s920, 4
        %s924 = sadd.s32 %s922, %s923
        %s925 = smul.addr %s924, 4
        %s926 = scalar_lea.vmem %s7, %s925
      $region60: #{_lambda_.1} parent=55 // pred_fallthru
        _
    $region56: #{_lambda_.1} parent=5 // pred_fallthru
      _
  $region6: #{_lambda_.1} parent=0 // loop_footer
    %s18 = sadd.s32 1, %s14
  $region7: #{_lambda_.1} parent=0 // loop_footer_branch
    %13 = sbr.rel target = $region3
  $region8: #{_lambda_.1} parent=0 // loop_exit
    _

</llo_original>
